<compile_context>
chip_gen: v7x
topology: tpu7x:2x2x1
jax: 0.10.0
libtpu: 0.0.40
codegen_flags: <defaults>
</compile_context>

<pallas_src>
from functools import partial

import jax
import jax.numpy as jnp
from jax import lax
from jax.experimental import pallas as pl
from jax.experimental.pallas import tpu as pltpu

N_EMBD = 384
BLOCK_SIZE = 32


def head_kernel(x_ref, wqkv_ref, o_ref):
    # x_ref   : (BB*T, C) f32   — batch-block of input rows (B*T flattened in wrapper)
    # wqkv_ref: (C, 3H)   bf16  — fused [k | q*(C**-0.5) | v] projection (init-time prep)
    # o_ref   : (BB, T//2, 2H) f32 — per batch, rows [0:T/2) | [T/2:T) packed lane-dense
    BB, half, two_h = o_ref.shape
    T = 2 * half
    H = two_h // 2

    # In-kernel bf16 cast of x (hidden under MXU/DMA); single fused QKV matmul,
    # f32 accumulation.
    x = x_ref[...].astype(jnp.bfloat16)                          # (BB*T, C)
    w = wqkv_ref[...]                                            # (C, 3H) bf16
    qkv = jnp.dot(x, w, preferred_element_type=jnp.float32)      # (BB*T, 3H) f32

    for b in range(BB):  # static unroll over the batch-block
        blk = qkv[b * T:(b + 1) * T, :]                          # (T, 3H)
        # bf16 operands for the two attention matmuls (f32 accumulation kept).
        k = blk[:, 0 * H:1 * H].astype(jnp.bfloat16)
        q = blk[:, 1 * H:2 * H].astype(jnp.bfloat16)             # scale pre-folded
        v = blk[:, 2 * H:3 * H].astype(jnp.bfloat16)

        # s[i, j] = sum_h q[i, h] * k[j, h] — contract head dim directly,
        # no explicit k.T relayout through the XLU.
        s = lax.dot_general(q, k, (((1,), (1,)), ((), ())),
                            preferred_element_type=jnp.float32)  # (T, T) f32

        # Causal (tril) mask: keep col <= row.  Diagonal is never masked, so no
        # fully-masked rows => no inf-inf NaN.
        row = lax.broadcasted_iota(jnp.int32, (T, T), 0)
        col = lax.broadcasted_iota(jnp.int32, (T, T), 1)
        s = jnp.where(col <= row, s, -jnp.inf)

        # Softmax along the last dim, f32; approx reciprocal lands in the EUP slot.
        m = jnp.max(s, axis=-1, keepdims=True)
        p = jnp.exp(s - m)
        denom = jnp.sum(p, axis=-1, keepdims=True)
        wei = (p * pl.reciprocal(denom, approx=True)).astype(jnp.bfloat16)

        out = jnp.dot(wei, v, preferred_element_type=jnp.float32)  # (T, H) f32

        # Lane-dense store: rows [0:T/2) and [T/2:T) side by side -> (T//2, 2H)
        # so the write is a full 128-lane unmasked store.
        o_ref[b] = jnp.concatenate([out[:half, :], out[half:, :]],
                                   axis=-1).astype(o_ref.dtype)


def prepare_head_weights(w_key, w_query, w_value):
    """One-time (init) weight prep.

    Fuses the three PyTorch-style (head_size, C) Linear weights into a single
    (C, 3H) matrix ordered [k | q | v], folds the C**-0.5 attention scale into
    the q columns, and casts to bf16 for the MXU.
    """
    C = w_key.shape[1]
    scale = C ** (-0.5)
    w_qkv = jnp.concatenate([w_key.T, w_query.T * scale, w_value.T], axis=1)
    return w_qkv.astype(jnp.bfloat16)


@partial(jax.jit, static_argnames=("batch_block",))
def head_forward(x, w_qkv, *, batch_block=1):
    """x: (B, T, C) f32; w_qkv: (C, 3H) bf16 from prepare_head_weights()."""
    B, T, C = x.shape
    H = w_qkv.shape[1] // 3
    BB = batch_block
    assert B % BB == 0, "batch_block must divide B"
    assert T % 2 == 0, "T must be even for the lane-dense packed output"

    # Free, contiguous reshape: the QKV projection runs over BB*T rows per step.
    x2 = x.reshape(B * T, C)

    packed = pl.pallas_call(
        head_kernel,
        out_shape=jax.ShapeDtypeStruct((B, T // 2, 2 * H), jnp.float32),
        grid_spec=pltpu.PrefetchScalarGridSpec(
            num_scalar_prefetch=0,
            grid=(B // BB,),
            in_specs=[
                pl.BlockSpec((BB * T, C), lambda g: (g, 0)),
                pl.BlockSpec((C, 3 * H), lambda g: (0, 0)),
            ],
            out_specs=pl.BlockSpec((BB, T // 2, 2 * H), lambda g: (g, 0, 0)),
        ),
        compiler_params=pltpu.CompilerParams(
            dimension_semantics=("parallel",)),
    )(x2, w_qkv)

    # Unpack (B, T//2, 2H) -> (B, T, H): left lane-half = rows [0:T/2),
    # right lane-half = rows [T/2:T).
    out = jnp.concatenate([packed[..., :H], packed[..., H:]], axis=-2)
    return out.astype(x.dtype)


def _default_batch_block(batch):
    """Single-core chips (v5e/v6e): fuse the whole batch into one grid step.
    Anything else (v7x megacore, unknown): keep grid=(B,) 'parallel' (safe everywhere)."""
    try:
        kind = jax.devices()[0].device_kind.lower()
    except Exception:
        return 1
    if any(s in kind for s in ("v5e", "v5 lite", "v6e", "v6 lite", "v6")):
        return batch
    return 1


def head_reference(x, w_key, w_query, w_value):
    """Pure-JAX f32 reference reproducing the PyTorch forward (eval mode)."""
    B, T, C = x.shape
    k = x @ w_key.T
    q = x @ w_query.T
    v = x @ w_value.T
    wei = (q @ jnp.swapaxes(k, -2, -1)) * C ** (-0.5)
    tril = jnp.tril(jnp.ones((BLOCK_SIZE, BLOCK_SIZE)))[:T, :T]
    wei = jnp.where(tril == 0, -jnp.inf, wei)
    wei = jax.nn.softmax(wei, axis=-1)
    return wei @ v


if __name__ == "__main__":
    key = jax.random.PRNGKey(0)
    B, T, C = 2, BLOCK_SIZE, N_EMBD     # T <= block_size, C = n_embd
    head_size = 64

    k_x, k_wk, k_wq, k_wv = jax.random.split(key, 4)
    x = jax.random.normal(k_x, (B, T, C), dtype=jnp.float32)
    # deterministic parameter init (PyTorch Linear weight shape: (out, in))
    w_key = jax.random.normal(k_wk, (head_size, C), dtype=jnp.float32) * 0.02
    w_query = jax.random.normal(k_wq, (head_size, C), dtype=jnp.float32) * 0.02
    w_value = jax.random.normal(k_wv, (head_size, C), dtype=jnp.float32) * 0.02

    # Init-time (one-off) weight fuse + scale fold + bf16 cast — not on the call path.
    w_qkv = jax.block_until_ready(prepare_head_weights(w_key, w_query, w_value))

    bb = _default_batch_block(B)

    out = head_forward(x, w_qkv, batch_block=bb)
    jax.block_until_ready(out)

    ref = head_reference(x, w_key, w_query, w_value)
    assert out.shape == (B, T, head_size)
    # bf16 matmul operands (f32 accumulation) + approx reciprocal => relaxed tolerance.
    max_err = float(jnp.max(jnp.abs(out - ref)))
    assert jnp.allclose(out, ref, atol=2e-2, rtol=2e-2), max_err

    print("KERNEL_OK")
</pallas_src>

<mosaic_0001>
module attributes {stable_mosaic.version = 11 : i64} {
  func.func @head_kernel(%arg0: i32, %arg1: memref<32x384xf32, #tpu.memory_space<vmem>>, %arg2: memref<384x192xbf16, #tpu.memory_space<vmem>>, %arg3: memref<1x16x128xf32, #tpu.memory_space<vmem>>) attributes {dimension_semantics = [#tpu.dimension_semantics<parallel>], iteration_bounds = array<i64: 2>, scalar_prefetch = 0 : i64, scratch_operands = 0 : i64, tpu.core_type = #tpu.core_type<tc>, window_params = [{transform_indices = @transform_0, window_bounds = array<i64: 32, 384>}, {pipeline_mode = #tpu.pipeline_mode<synchronous>, transform_indices = @transform_1, window_bounds = array<i64: 384, 192>}, {transform_indices = @transform_2, window_bounds = array<i64: 1, 16, 128>}]} {
    %c0 = arith.constant 0 : index
    %c0_0 = arith.constant 0 : index
    %0 = vector.load %arg1[%c0, %c0_0] : memref<32x384xf32, #tpu.memory_space<vmem>>, vector<32x384xf32>
    %1 = arith.truncf %0 : vector<32x384xf32> to vector<32x384xbf16>
    %c0_1 = arith.constant 0 : index
    %c0_2 = arith.constant 0 : index
    %2 = vector.load %arg2[%c0_1, %c0_2] : memref<384x192xbf16, #tpu.memory_space<vmem>>, vector<384x192xbf16>
    %cst = arith.constant dense<0.000000e+00> : vector<32x192xf32>
    %3 = tpu.matmul %1, %2, %cst {dimension_numbers = #tpu.dot_dimension_numbers<[1], [0], [0], [1], [0, 0, 1, 1], [], []>} : vector<32x384xbf16>, vector<384x192xbf16>, vector<32x192xf32> -> vector<32x192xf32>
    %4 = vector.extract_strided_slice %3 {offsets = [0, 0], sizes = [32, 64], strides = [1, 1]} : vector<32x192xf32> to vector<32x64xf32>
    %5 = arith.truncf %4 : vector<32x64xf32> to vector<32x64xbf16>
    %6 = vector.extract_strided_slice %3 {offsets = [0, 64], sizes = [32, 64], strides = [1, 1]} : vector<32x192xf32> to vector<32x64xf32>
    %7 = arith.truncf %6 : vector<32x64xf32> to vector<32x64xbf16>
    %8 = vector.extract_strided_slice %3 {offsets = [0, 128], sizes = [32, 64], strides = [1, 1]} : vector<32x192xf32> to vector<32x64xf32>
    %9 = arith.truncf %8 : vector<32x64xf32> to vector<32x64xbf16>
    %cst_3 = arith.constant dense<0.000000e+00> : vector<32x32xf32>
    %10 = tpu.matmul %7, %5, %cst_3 {dimension_numbers = #tpu.dot_dimension_numbers<[1], [1], [0], [0], [0, 0, 1, 0], [], []>} : vector<32x64xbf16>, vector<32x64xbf16>, vector<32x32xf32> -> vector<32x32xf32>
    %11 = tpu.iota {dimensions = array<i32: 0>} : vector<32x32xi32>
    %12 = tpu.iota {dimensions = array<i32: 1>} : vector<32x32xi32>
    %13 = arith.cmpi sle, %12, %11 : vector<32x32xi32>
    %cst_4 = arith.constant 0xFF800000 : f32
    %14 = vector.broadcast %cst_4 : f32 to vector<32x32xf32>
    %15 = arith.select %13, %10, %14 : vector<32x32xi1>, vector<32x32xf32>
    %cst_5 = arith.constant dense<0xFF800000> : vector<32xf32>
    %16 = vector.multi_reduction <maximumf>, %15, %cst_5 [1] : vector<32x32xf32> to vector<32xf32>
    %17 = vector.shape_cast %16 : vector<32xf32> to vector<32x1xf32>
    %18 = vector.broadcast %17 : vector<32x1xf32> to vector<32x32xf32>
    %19 = arith.subf %15, %18 : vector<32x32xf32>
    %20 = math.exp %19 : vector<32x32xf32>
    %cst_6 = arith.constant dense<0.000000e+00> : vector<32xf32>
    %21 = vector.multi_reduction <add>, %20, %cst_6 [1] : vector<32x32xf32> to vector<32xf32>
    %22 = vector.shape_cast %21 : vector<32xf32> to vector<32x1xf32>
    %23 = tpu.reciprocal %22 {approx = true} : vector<32x1xf32> -> vector<32x1xf32>
    %24 = vector.broadcast %23 : vector<32x1xf32> to vector<32x32xf32>
    %25 = arith.mulf %20, %24 : vector<32x32xf32>
    %26 = arith.truncf %25 : vector<32x32xf32> to vector<32x32xbf16>
    %cst_7 = arith.constant dense<0.000000e+00> : vector<32x64xf32>
    %27 = tpu.matmul %26, %9, %cst_7 {dimension_numbers = #tpu.dot_dimension_numbers<[1], [0], [0], [1], [0, 0, 1, 1], [], []>} : vector<32x32xbf16>, vector<32x64xbf16>, vector<32x64xf32> -> vector<32x64xf32>
    %28 = vector.extract_strided_slice %27 {offsets = [0, 0], sizes = [16, 64], strides = [1, 1]} : vector<32x64xf32> to vector<16x64xf32>
    %29 = vector.extract_strided_slice %27 {offsets = [16, 0], sizes = [16, 64], strides = [1, 1]} : vector<32x64xf32> to vector<16x64xf32>
    %30 = tpu.concatenate %28, %29 in 1 : vector<16x64xf32>, vector<16x64xf32> -> vector<16x128xf32>
    %c0_8 = arith.constant 0 : index
    %c0_9 = arith.constant 0 : index
    %c0_10 = arith.constant 0 : index
    %31 = vector.load %arg3[%c0_8, %c0_9, %c0_10] : memref<1x16x128xf32, #tpu.memory_space<vmem>>, vector<1x16x128xf32>
    %32 = vector.shape_cast %31 : vector<1x16x128xf32> to vector<16x128xf32>
    %33 = vector.shape_cast %30 : vector<16x128xf32> to vector<1x16x128xf32>
    tpu.vector_store %arg3[%c0_8, %c0_9, %c0_10], %33 {strides = array<i32>} : memref<1x16x128xf32, #tpu.memory_space<vmem>>, vector<1x16x128xf32>,
    return
  }
  func.func @transform_0(%arg0: i32) -> (i32, i32) {
    %c0_i32 = arith.constant 0 : i32
    %c0_i32_0 = arith.constant 0 : i32
    return %arg0, %c0_i32 : i32, i32
  }
  func.func @transform_1(%arg0: i32) -> (i32, i32) {
    %c0_i32 = arith.constant 0 : i32
    %c0_i32_0 = arith.constant 0 : i32
    %c0_i32_1 = arith.constant 0 : i32
    return %c0_i32, %c0_i32_0 : i32, i32
  }
  func.func @transform_2(%arg0: i32) -> (i32, i32, i32) {
    %c0_i32 = arith.constant 0 : i32
    %c0_i32_0 = arith.constant 0 : i32
    %c0_i32_1 = arith.constant 0 : i32
    return %arg0, %c0_i32, %c0_i32_0 : i32, i32, i32
  }
}

</mosaic_0001>

<llo_original>
// kernel: head_forward.1
$region0: #{head_forward.1}
  #allocation0 [shape = 'u32[]', space=smem, size = 0x4, offset = 0x4, fixed_abs, tag = 'smem constant byte address 0x4 - core index']
  #allocation1 [shape = 'u32[144,128]{1,0:T(1,128)}', space=vmem, size = 0x12000, scoped, tag = 'internal scratch']
  %s0 = inlined_call_operand.vmem [shape: f32[64,384], index: 0, kind: input, shape index: {}]
  %s1 = inlined_call_operand.vmem [shape: bf16[384,192], index: 1, kind: input, shape index: {}]
  %s2 = inlined_call_operand.vmem [shape: f32[2,16,128], index: 2, kind: output, shape index: {}]
  %s3 = sld [smem:[#allocation0]]
  $region41: #{head_forward.1} parent=0
    _
  %s5 = ssub.s32 1, %s3
  %s6 = scalar_select 0, %s5, %s3
  loop: start=0, step=1, limit=4
  $region2: #{head_forward.1} parent=0 // loop_pre_header
    _
  $region3: #{head_forward.1} parent=0 // loop_header
    %s8 = sphi 0, %s12
    %p9 = scmp.ge.s32.totalorder %s8, 4
    %s18 = sphi 0, %s20
    %s21 = sphi 0, %s18
    %s22 = sphi 0, %s21
    %s38 = sphi 0, %s22
    %s42 = sphi 0, %s42
    %s44 = sphi 0, %s42
    %s45 = sphi 0, %s44
    %s59 = sphi 0, %s45
    %s65 = sphi 0, %s67
    %s68 = sphi 0, %s65
    %s69 = sphi 0, %s68
    %s85 = sphi 0, %s69
  $region4: #{head_forward.1} parent=0 // loop_header_branch
    %11 = sbr.rel (%p9) target = $region8
  $region5: #{head_forward.1} parent=0 // loop_body
    %s13 = ssub.s32 %s8, 1
    %s14 = ssub.s32 %s8, 2
    %s15 = sadd.s32 %s8, 1
    %s16 = ssub.s32 %s8, %s15
    %p17 = scmp.eq.s32.totalorder %s16, 0
    %s19 = sadd.s32 %s18, 1
    %s20 = scalar_select %p17, %s18, %s19
    %p23 = pneg %p17
    %p24 = scmp.eq.s32.totalorder %s8, 1
    %p25 = por %p23, %p24
    %p26 = scmp.ne.s32.totalorder %s18, %s21
    %p27 = scmp.eq.s32.totalorder %s8, 0
    %p28 = por %p26, %p27
    %p29 = scmp.ne.s32.totalorder %s18, %s21
    %p30 = scmp.eq.s32.totalorder %s13, 1
    %p31 = por %p29, %p30
    %p32 = scmp.ne.s32.totalorder %s21, %s22
    %p33 = scmp.eq.s32.totalorder %s13, 0
    %p34 = por %p32, %p33
    %p35 = scmp.ne.s32.totalorder %s21, %s22
    %p36 = scmp.eq.s32.totalorder %s14, 1
    %p37 = por %p35, %p36
    %p39 = scmp.ne.s32.totalorder %s22, %s38
    %p40 = scmp.eq.s32.totalorder %s14, 0
    %p41 = por %p39, %p40
    %s43 = sadd.s32 %s42, 1
    %p46 = scmp.eq.s32.totalorder %s8, 1
    %p47 = scmp.ne.s32.totalorder %s42, %s44
    %p48 = scmp.eq.s32.totalorder %s8, 0
    %p49 = por %p47, %p48
    %p50 = scmp.ne.s32.totalorder %s42, %s44
    %p51 = scmp.eq.s32.totalorder %s13, 1
    %p52 = por %p50, %p51
    %p53 = scmp.ne.s32.totalorder %s44, %s45
    %p54 = scmp.eq.s32.totalorder %s13, 0
    %p55 = por %p53, %p54
    %p56 = scmp.ne.s32.totalorder %s44, %s45
    %p57 = scmp.eq.s32.totalorder %s14, 1
    %p58 = por %p56, %p57
    %p60 = scmp.ne.s32.totalorder %s45, %s59
    %p61 = scmp.eq.s32.totalorder %s14, 0
    %p62 = por %p60, %p61
    %s63 = ssub.s32 %s8, %s15
    %p64 = scmp.eq.s32.totalorder %s63, 0
    %s66 = sadd.s32 %s65, 1
    %s67 = scalar_select %p64, %s65, %s66
    %p70 = pneg %p64
    %p71 = scmp.eq.s32.totalorder %s8, 1
    %p72 = por %p70, %p71
    %p73 = scmp.ne.s32.totalorder %s65, %s68
    %p74 = scmp.eq.s32.totalorder %s8, 0
    %p75 = por %p73, %p74
    %p76 = scmp.ne.s32.totalorder %s65, %s68
    %p77 = scmp.eq.s32.totalorder %s13, 1
    %p78 = por %p76, %p77
    %p79 = scmp.ne.s32.totalorder %s68, %s69
    %p80 = scmp.eq.s32.totalorder %s13, 0
    %p81 = por %p79, %p80
    %p82 = scmp.ne.s32.totalorder %s68, %s69
    %p83 = scmp.eq.s32.totalorder %s14, 1
    %p84 = por %p82, %p83
    %p86 = scmp.ne.s32.totalorder %s69, %s85
    %p87 = scmp.eq.s32.totalorder %s14, 0
    %p88 = por %p86, %p87
    %p89 = scmp.le.s32.totalorder 1, %s8
    %p90 = scmp.lt.s32.totalorder %s8, 3
    %p91 = pnand %p89, %p90
    %p92 = pneg %p91
    // Predicated region
    $region9: #{head_forward.1} parent=5 // pred_check
      _
    $region10: #{head_forward.1} parent=5 // pred_check_branch
      %94 = sbr.rel (%p91) target = $region12
    $region11: #{head_forward.1} parent=5 // pred_region
      %s95 = ssub.s32 %s8, 1
      // Predicated region
      $region13: #{head_forward.1} parent=11 // pred_check
        %p96 = pneg %p55
      $region14: #{head_forward.1} parent=11 // pred_check_branch
        %98 = sbr.rel (%p96) target = $region16
      $region15: #{head_forward.1} parent=11 // pred_region
        _
      $region16: #{head_forward.1} parent=11 // pred_fallthru
        _
    $region12: #{head_forward.1} parent=5 // pred_fallthru
      _
    %p99 = scmp.lt.s32.totalorder %s8, 2
    // Predicated region
    $region17: #{head_forward.1} parent=5 // pred_check
      %p100 = pneg %p99
    $region18: #{head_forward.1} parent=5 // pred_check_branch
      %102 = sbr.rel (%p100) target = $region20
    $region19: #{head_forward.1} parent=5 // pred_region
      // Predicated region
      $region21: #{head_forward.1} parent=19 // pred_check
        %p103 = pneg %p28
      $region22: #{head_forward.1} parent=19 // pred_check_branch
        %105 = sbr.rel (%p103) target = $region24
      $region23: #{head_forward.1} parent=19 // pred_region
        %s106 = smul.u32 4, %s8
        %p107 = scmp.lt.s32.totalorder %s106, 7
        %s108 = scalar_select %p107, %s106, 7
        %s109 = smul.addr %s108, 3
        %s110 = smul.addr %s109, 8
        %s111 = scalar_lea.vmem %s0, %s110
        %s112 = smul.u32 4, %s8
      $region24: #{head_forward.1} parent=19 // pred_fallthru
        _
    $region20: #{head_forward.1} parent=5 // pred_fallthru
      _
    %p113 = scmp.le.s32.totalorder 1, %s8
    %p114 = scmp.lt.s32.totalorder %s8, 3
    %p115 = pnand %p113, %p114
    %p116 = pneg %p115
    // Predicated region
    $region25: #{head_forward.1} parent=5 // pred_check
      _
    $region26: #{head_forward.1} parent=5 // pred_check_branch
      %118 = sbr.rel (%p115) target = $region28
    $region27: #{head_forward.1} parent=5 // pred_region
      %s119 = ssub.s32 %s8, 1
      %s120 = smul.u32 4, %s13
      %p121 = scmp.lt.s32.totalorder %s120, 7
      %s122 = scalar_select %p121, %s120, 7
      %s123 = smul.addr %s122, 3
      %s124 = smul.addr %s123, 8
      %s125 = scalar_lea.vmem %s0, %s124
      %p126 = pneg %p34
      %p127 = pneg %p31
      %p128 = pneg %p55
      %p129 = pneg %p52
      %p130 = pneg %p81
      %p131 = pneg %p78
      %p132 = scmp.lt.s32.totalorder %s13, 1
      %s133 = scalar_select %p132, %s13, 1
      %s134 = smul.addr %s133, 2
      %s135 = smul.addr %s134, 8
      %s136 = scalar_lea.vmem %s2, %s135
      %s137 = smul.u32 4, %s13
      %p138 = scmp.lt.s32.totalorder %s137, 7
      %s139 = scalar_select %p138, %s137, 7
      %s140 = smul.addr %s139, 3
      %s141 = smul.addr %s140, 8
      %s142 = scalar_lea.vmem %s0, %s141
      %s143 = smul.u32 4, %s13
      %p144 = scmp.lt.s32.totalorder %s13, 1
      %s145 = scalar_select %p144, %s13, 1
      %s146 = smul.addr %s145, 2
      %s147 = smul.addr %s146, 8
      %s148 = scalar_lea.vmem %s2, %s147
      %v150 = vld [vmem:[%s142] sm:$0xff]
      %v151 = vld [vmem:[%s142 + $0x8] sm:$0xff]
      %v152 = vld [vmem:[%s142 + $0x10] sm:$0xff]
      %v153 = vld [vmem:[%s142 + $0x18] sm:$0xff]
      %v154 = vld [vmem:[%s142 + $0x20] sm:$0xff]
      %v155 = vld [vmem:[%s142 + $0x28] sm:$0xff]
      %v156 = vld [vmem:[%s142 + $0x30] sm:$0xff]
      %v157 = vld [vmem:[%s142 + $0x38] sm:$0xff]
      %v158 = vld [vmem:[%s142 + $0x40] sm:$0xff]
      %v159 = vld [vmem:[%s142 + $0x48] sm:$0xff]
      %v160 = vld [vmem:[%s142 + $0x50] sm:$0xff]
      %v161 = vld [vmem:[%s142 + $0x58] sm:$0xff]
      %v162 = vpack.c.bf16 %v153, %v150
      %v163 = vpack.c.bf16 %v154, %v151
      %v164 = vpack.c.bf16 %v155, %v152
      %v165 = vpack.c.bf16 %v159, %v156
      %v166 = vpack.c.bf16 %v160, %v157
      %v167 = vpack.c.bf16 %v161, %v158
      %v168 = vld [vmem:[%s1] sm:$0xff]
      %v169 = vld [vmem:[%s1 + $0x8] sm:$0xff]
      %v170 = vld [vmem:[%s1 + $0x10] sm:$0xff]
      %v171 = vld [vmem:[%s1 + $0x18] sm:$0xff]
      %v172 = vld [vmem:[%s1 + $0x20] sm:$0xff]
      %v173 = vld [vmem:[%s1 + $0x28] sm:$0xff]
      %v174 = vld [vmem:[%s1 + $0x30] sm:$0xff]
      %v175 = vld [vmem:[%s1 + $0x38] sm:$0xff]
      %v176 = vld [vmem:[%s1 + $0x40] sm:$0xff]
      %v177 = vld [vmem:[%s1 + $0x48] sm:$0xff]
      %v178 = vld [vmem:[%s1 + $0x50] sm:$0xff]
      %v179 = vld [vmem:[%s1 + $0x58] sm:$0xff]
      %v180 = vld [vmem:[%s1 + $0x60] sm:$0xff]
      %v181 = vld [vmem:[%s1 + $0x68] sm:$0xff]
      %v182 = vld [vmem:[%s1 + $0x70] sm:$0xff]
      %v183 = vld [vmem:[%s1 + $0x78] sm:$0xff]
      %v184 = vld [vmem:[%s1 + $0x80] sm:$0xff]
      %v185 = vld [vmem:[%s1 + $0x88] sm:$0xff]
      %v186 = vld [vmem:[%s1 + $0x90] sm:$0xff]
      %v187 = vld [vmem:[%s1 + $0x98] sm:$0xff]
      %v188 = vld [vmem:[%s1 + $0xa0] sm:$0xff]
      %v189 = vld [vmem:[%s1 + $0xa8] sm:$0xff]
      %v190 = vld [vmem:[%s1 + $0xb0] sm:$0xff]
      %v191 = vld [vmem:[%s1 + $0xb8] sm:$0xff]
      %v192 = vld [vmem:[%s1 + $0xc0] sm:$0xff]
      %v193 = vld [vmem:[%s1 + $0xc8] sm:$0xff]
      %v194 = vld [vmem:[%s1 + $0xd0] sm:$0xff]
      %v195 = vld [vmem:[%s1 + $0xd8] sm:$0xff]
      %v196 = vld [vmem:[%s1 + $0xe0] sm:$0xff]
      %v197 = vld [vmem:[%s1 + $0xe8] sm:$0xff]
      %v198 = vld [vmem:[%s1 + $0xf0] sm:$0xff]
      %v199 = vld [vmem:[%s1 + $0xf8] sm:$0xff]
      %v200 = vld [vmem:[%s1 + $0x100] sm:$0xff]
      %v201 = vld [vmem:[%s1 + $0x108] sm:$0xff]
      %v202 = vld [vmem:[%s1 + $0x110] sm:$0xff]
      %v203 = vld [vmem:[%s1 + $0x118] sm:$0xff]
      %v204 = vld [vmem:[%s1 + $0x120] sm:$0xff]
      %v205 = vld [vmem:[%s1 + $0x128] sm:$0xff]
      %v206 = vld [vmem:[%s1 + $0x130] sm:$0xff]
      %v207 = vld [vmem:[%s1 + $0x138] sm:$0xff]
      %v208 = vld [vmem:[%s1 + $0x140] sm:$0xff]
      %v209 = vld [vmem:[%s1 + $0x148] sm:$0xff]
      %v210 = vld [vmem:[%s1 + $0x150] sm:$0xff]
      %v211 = vld [vmem:[%s1 + $0x158] sm:$0xff]
      %v212 = vld [vmem:[%s1 + $0x160] sm:$0xff]
      %v213 = vld [vmem:[%s1 + $0x168] sm:$0xff]
      %v214 = vld [vmem:[%s1 + $0x170] sm:$0xff]
      %v215 = vld [vmem:[%s1 + $0x178] sm:$0xff]
      %v264 = vunpack.c.l.b16 %v168
      %v265 = vunpack.c.h.b16 %v168
      %v266 = vunpack.c.l.b16 %v169
      %v267 = vunpack.c.h.b16 %v169
      %v268 = vunpack.c.l.b16 %v170
      %v269 = vunpack.c.h.b16 %v170
      %v270 = vunpack.c.l.b16 %v171
      %v271 = vunpack.c.h.b16 %v171
      %v272 = vunpack.c.l.b16 %v172
      %v273 = vunpack.c.h.b16 %v172
      %v274 = vunpack.c.l.b16 %v173
      %v275 = vunpack.c.h.b16 %v173
      %v276 = vunpack.c.l.b16 %v174
      %v277 = vunpack.c.h.b16 %v174
      %v278 = vunpack.c.l.b16 %v175
      %v279 = vunpack.c.h.b16 %v175
      %v280 = vunpack.c.l.b16 %v176
      %v281 = vunpack.c.h.b16 %v176
      %v282 = vunpack.c.l.b16 %v177
      %v283 = vunpack.c.h.b16 %v177
      %v284 = vunpack.c.l.b16 %v178
      %v285 = vunpack.c.h.b16 %v178
      %v286 = vunpack.c.l.b16 %v179
      %v287 = vunpack.c.h.b16 %v179
      %v288 = vunpack.c.l.b16 %v180
      %v289 = vunpack.c.h.b16 %v180
      %v290 = vunpack.c.l.b16 %v181
      %v291 = vunpack.c.h.b16 %v181
      %v292 = vunpack.c.l.b16 %v182
      %v293 = vunpack.c.h.b16 %v182
      %v294 = vunpack.c.l.b16 %v183
      %v295 = vunpack.c.h.b16 %v183
      %v296 = vunpack.c.l.b16 %v184
      %v297 = vunpack.c.h.b16 %v184
      %v298 = vunpack.c.l.b16 %v185
      %v299 = vunpack.c.h.b16 %v185
      %v300 = vunpack.c.l.b16 %v186
      %v301 = vunpack.c.h.b16 %v186
      %v302 = vunpack.c.l.b16 %v187
      %v303 = vunpack.c.h.b16 %v187
      %v304 = vunpack.c.l.b16 %v188
      %v305 = vunpack.c.h.b16 %v188
      %v306 = vunpack.c.l.b16 %v189
      %v307 = vunpack.c.h.b16 %v189
      %v308 = vunpack.c.l.b16 %v190
      %v309 = vunpack.c.h.b16 %v190
      %v310 = vunpack.c.l.b16 %v191
      %v311 = vunpack.c.h.b16 %v191
      %v312 = vunpack.c.l.b16 %v192
      %v313 = vunpack.c.h.b16 %v192
      %v314 = vunpack.c.l.b16 %v193
      %v315 = vunpack.c.h.b16 %v193
      %v316 = vunpack.c.l.b16 %v194
      %v317 = vunpack.c.h.b16 %v194
      %v318 = vunpack.c.l.b16 %v195
      %v319 = vunpack.c.h.b16 %v195
      %v320 = vunpack.c.l.b16 %v196
      %v321 = vunpack.c.h.b16 %v196
      %v322 = vunpack.c.l.b16 %v197
      %v323 = vunpack.c.h.b16 %v197
      %v324 = vunpack.c.l.b16 %v198
      %v325 = vunpack.c.h.b16 %v198
      %v326 = vunpack.c.l.b16 %v199
      %v327 = vunpack.c.h.b16 %v199
      %v328 = vunpack.c.l.b16 %v200
      %v329 = vunpack.c.h.b16 %v200
      %v330 = vunpack.c.l.b16 %v201
      %v331 = vunpack.c.h.b16 %v201
      %v332 = vunpack.c.l.b16 %v202
      %v333 = vunpack.c.h.b16 %v202
      %v334 = vunpack.c.l.b16 %v203
      %v335 = vunpack.c.h.b16 %v203
      %v336 = vunpack.c.l.b16 %v204
      %v337 = vunpack.c.h.b16 %v204
      %v338 = vunpack.c.l.b16 %v205
      %v339 = vunpack.c.h.b16 %v205
      %v340 = vunpack.c.l.b16 %v206
      %v341 = vunpack.c.h.b16 %v206
      %v342 = vunpack.c.l.b16 %v207
      %v343 = vunpack.c.h.b16 %v207
      %v344 = vunpack.c.l.b16 %v208
      %v345 = vunpack.c.h.b16 %v208
      %v346 = vunpack.c.l.b16 %v209
      %v347 = vunpack.c.h.b16 %v209
      %v348 = vunpack.c.l.b16 %v210
      %v349 = vunpack.c.h.b16 %v210
      %v350 = vunpack.c.l.b16 %v211
      %v351 = vunpack.c.h.b16 %v211
      %v352 = vunpack.c.l.b16 %v212
      %v353 = vunpack.c.h.b16 %v212
      %v354 = vunpack.c.l.b16 %v213
      %v355 = vunpack.c.h.b16 %v213
      %v356 = vunpack.c.l.b16 %v214
      %v357 = vunpack.c.h.b16 %v214
      %v358 = vunpack.c.l.b16 %v215
      %v359 = vunpack.c.h.b16 %v215
      %v360 = vpack.c.b16 %v266, %v264
      %v361 = vpack.c.b16 %v267, %v265
      %v362 = vpack.c.b16 %v270, %v268
      %v363 = vpack.c.b16 %v271, %v269
      %v364 = vpack.c.b16 %v274, %v272
      %v365 = vpack.c.b16 %v275, %v273
      %v366 = vpack.c.b16 %v278, %v276
      %v367 = vpack.c.b16 %v279, %v277
      %v368 = vpack.c.b16 %v282, %v280
      %v369 = vpack.c.b16 %v283, %v281
      %v370 = vpack.c.b16 %v286, %v284
      %v371 = vpack.c.b16 %v287, %v285
      %v372 = vpack.c.b16 %v290, %v288
      %v373 = vpack.c.b16 %v291, %v289
      %v374 = vpack.c.b16 %v294, %v292
      %v375 = vpack.c.b16 %v295, %v293
      %v376 = vpack.c.b16 %v298, %v296
      %v377 = vpack.c.b16 %v299, %v297
      %v378 = vpack.c.b16 %v302, %v300
      %v379 = vpack.c.b16 %v303, %v301
      %v380 = vpack.c.b16 %v306, %v304
      %v381 = vpack.c.b16 %v307, %v305
      %v382 = vpack.c.b16 %v310, %v308
      %v383 = vpack.c.b16 %v311, %v309
      %v384 = vpack.c.b16 %v314, %v312
      %v385 = vpack.c.b16 %v315, %v313
      %v386 = vpack.c.b16 %v318, %v316
      %v387 = vpack.c.b16 %v319, %v317
      %v388 = vpack.c.b16 %v322, %v320
      %v389 = vpack.c.b16 %v323, %v321
      %v390 = vpack.c.b16 %v326, %v324
      %v391 = vpack.c.b16 %v327, %v325
      %v392 = vpack.c.b16 %v330, %v328
      %v393 = vpack.c.b16 %v331, %v329
      %v394 = vpack.c.b16 %v334, %v332
      %v395 = vpack.c.b16 %v335, %v333
      %v396 = vpack.c.b16 %v338, %v336
      %v397 = vpack.c.b16 %v339, %v337
      %v398 = vpack.c.b16 %v342, %v340
      %v399 = vpack.c.b16 %v343, %v341
      %v400 = vpack.c.b16 %v346, %v344
      %v401 = vpack.c.b16 %v347, %v345
      %v402 = vpack.c.b16 %v350, %v348
      %v403 = vpack.c.b16 %v351, %v349
      %v404 = vpack.c.b16 %v354, %v352
      %v405 = vpack.c.b16 %v355, %v353
      %v406 = vpack.c.b16 %v358, %v356
      %v407 = vpack.c.b16 %v359, %v357
      %456 = vmatprep.subr.bf16.mxu0 %v361
      %457 = vmatpush1.bf16.msra.mxu0 %v360
      %458 = vmatprep.subr.bf16.mxu0 %v363
      %459 = vmatpush1.bf16.msra.mxu0 %v362
      %460 = vmatprep.subr.bf16.mxu0 %v365
      %461 = vmatpush1.bf16.msra.mxu0 %v364
      %462 = vmatprep.subr.bf16.mxu0 %v367
      %463 = vmatpush1.bf16.msra.mxu0 %v366
      %464 = vmatprep.subr.bf16.mxu0 %v369
      %465 = vmatpush1.bf16.msra.mxu0 %v368
      %466 = vmatprep.subr.bf16.mxu0 %v371
      %467 = vmatpush1.bf16.msra.mxu0 %v370
      %468 = vmatprep.subr.bf16.mxu0 %v373
      %469 = vmatpush1.bf16.msra.mxu0 %v372
      %470 = vmatprep.subr.bf16.mxu0 %v375
      %471 = vmatpush1.bf16.msra.mxu0 %v374
      %472 = vmatprep.subr.bf16.mxu0 %v377
      %473 = vmatpush1.bf16.msra.mxu0 %v376
      %474 = vmatprep.subr.bf16.mxu0 %v379
      %475 = vmatpush1.bf16.msra.mxu0 %v378
      %476 = vmatprep.subr.bf16.mxu0 %v381
      %477 = vmatpush1.bf16.msra.mxu0 %v380
      %478 = vmatprep.subr.bf16.mxu0 %v383
      %479 = vmatpush1.bf16.msra.mxu0 %v382
      %480 = vmatprep.subr.bf16.mxu0 %v385
      %481 = vmatpush1.bf16.msra.mxu0 %v384
      %482 = vmatprep.subr.bf16.mxu0 %v387
      %483 = vmatpush1.bf16.msra.mxu0 %v386
      %484 = vmatprep.subr.bf16.mxu0 %v389
      %485 = vmatpush1.bf16.msra.mxu0 %v388
      %486 = vmatprep.subr.bf16.mxu0 %v391
      %487 = vmatpush1.bf16.msra.mxu0 %v390
      %488 = vmatprep.mubr.bf16.mxu0 %v163
      %489 = vmatmul.mubr.bf16.gmra.mrb[0].mxu0 %v162
      %v490 = vpop.f32.mrb[0].mxu0
      %v491 = vadd.f32 0.0, %v490
      %v492 = vpop.f32.mrb[0].mxu0
      %v493 = vadd.f32 0.0, %v492
      %v494 = vpop.f32.mrb[0].mxu0
      %v495 = vadd.f32 0.0, %v494
      %v496 = vpop.f32.mrb[0].mxu0
      %v497 = vadd.f32 0.0, %v496
      %498 = vmatprep.mubr.bf16.mxu0 %v166
      %499 = vmatmul.mubr.bf16.gmra.mrb[0].mxu0 %v165
      %v500 = vpop.f32.mrb[0].mxu0
      %v501 = vadd.f32 0.0, %v500
      %v502 = vpop.f32.mrb[0].mxu0
      %v503 = vadd.f32 0.0, %v502
      %v504 = vpop.f32.mrb[0].mxu0
      %v505 = vadd.f32 0.0, %v504
      %v506 = vpop.f32.mrb[0].mxu0
      %v507 = vadd.f32 0.0, %v506
      %508 = vdwg.mxu0
      %509 = vmatprep.subr.bf16.mxu0 %v393
      %510 = vmatpush1.bf16.msra.mxu0 %v392
      %511 = vmatprep.subr.bf16.mxu0 %v395
      %512 = vmatpush1.bf16.msra.mxu0 %v394
      %513 = vmatprep.subr.bf16.mxu0 %v397
      %514 = vmatpush1.bf16.msra.mxu0 %v396
      %515 = vmatprep.subr.bf16.mxu0 %v399
      %516 = vmatpush1.bf16.msra.mxu0 %v398
      %517 = vmatprep.subr.bf16.mxu0 %v401
      %518 = vmatpush1.bf16.msra.mxu0 %v400
      %519 = vmatprep.subr.bf16.mxu0 %v403
      %520 = vmatpush1.bf16.msra.mxu0 %v402
      %521 = vmatprep.subr.bf16.mxu0 %v405
      %522 = vmatpush1.bf16.msra.mxu0 %v404
      %523 = vmatprep.subr.bf16.mxu0 %v407
      %524 = vmatpush1.bf16.msra.mxu0 %v406
      %525 = vmatprep.subr.bf16.mxu0 0
      %526 = vmatpush1.bf16.msra.mxu0 0
      %527 = vmatprep.subr.bf16.mxu0 0
      %528 = vmatpush1.bf16.msra.mxu0 0
      %529 = vmatprep.subr.bf16.mxu0 0
      %530 = vmatpush1.bf16.msra.mxu0 0
      %531 = vmatprep.subr.bf16.mxu0 0
      %532 = vmatpush1.bf16.msra.mxu0 0
      %533 = vmatprep.subr.bf16.mxu0 0
      %534 = vmatpush1.bf16.msra.mxu0 0
      %535 = vmatprep.subr.bf16.mxu0 0
      %536 = vmatpush1.bf16.msra.mxu0 0
      %537 = vmatprep.subr.bf16.mxu0 0
      %538 = vmatpush1.bf16.msra.mxu0 0
      %539 = vmatprep.subr.bf16.mxu0 0
      %540 = vmatpush1.bf16.msra.mxu0 0
      %541 = vmatprep.mubr.bf16.mxu0 0
      %542 = vmatmul.mubr.bf16.gmra.mrb[0].mxu0 %v164
      %v543 = vpop.f32.mrb[0].mxu0
      %v544 = vadd.f32 %v491, %v543
      %v545 = vpop.f32.mrb[0].mxu0
      %v546 = vadd.f32 %v493, %v545
      %v547 = vpop.f32.mrb[0].mxu0
      %v548 = vadd.f32 %v495, %v547
      %v549 = vpop.f32.mrb[0].mxu0
      %v550 = vadd.f32 %v497, %v549
      %551 = vmatprep.mubr.bf16.mxu0 0
      %552 = vmatmul.mubr.bf16.gmra.mrb[0].mxu0 %v167
      %v553 = vpop.f32.mrb[0].mxu0
      %v554 = vadd.f32 %v501, %v553
      %v555 = vpop.f32.mrb[0].mxu0
      %v556 = vadd.f32 %v503, %v555
      %v557 = vpop.f32.mrb[0].mxu0
      %v558 = vadd.f32 %v505, %v557
      %v559 = vpop.f32.mrb[0].mxu0
      %v560 = vadd.f32 %v507, %v559
      %561 = vdwg.mxu0
      %v562 = vpack.c.bf16 %v548, %v544
      %v563 = vpack.c.bf16 %v558, %v554
      %v564 = vpack.c.bf16 %v550, %v546
      %v565 = vpack.c.bf16 %v560, %v556
      %568 = vrot.lane.b32.xlu0 %v562, 64
      %v569 = vpop.permute.xlu0 %568
      %570 = vrot.lane.b32.xlu0 %v563, 64
      %v571 = vpop.permute.xlu0 %570
      %vm572 = vcmask 523264
      %v574 = vsel %vm572, %v569, 0
      %v577 = vsel %vm572, %v571, 0
      %v580 = vsel %vm572, %v562, 0
      %v583 = vsel %vm572, %v563, 0
      %585 = vmatprep.subr.bf16.mxu0 0
      %586 = vmatpush1.bf16.xpose.msra.mxu0 %v580
      %587 = vmatprep.subr.bf16.mxu0 0
      %588 = vmatpush1.bf16.xpose.msra.mxu0 %v583
      %589 = vmatprep.subr.bf16.mxu0 0
      %590 = vmatpush1.bf16.xpose.msra.mxu0 0
      %591 = vmatprep.subr.bf16.mxu0 0
      %592 = vmatpush1.bf16.xpose.msra.mxu0 0
      %593 = vmatprep.subr.bf16.mxu0 0
      %594 = vmatpush1.bf16.xpose.msra.mxu0 0
      %595 = vmatprep.subr.bf16.mxu0 0
      %596 = vmatpush1.bf16.xpose.msra.mxu0 0
      %597 = vmatprep.subr.bf16.mxu0 0
      %598 = vmatpush1.bf16.xpose.msra.mxu0 0
      %599 = vmatprep.subr.bf16.mxu0 0
      %600 = vmatpush1.bf16.xpose.msra.mxu0 0
      %601 = vmatprep.subr.bf16.mxu0 0
      %602 = vmatpush1.bf16.xpose.msra.mxu0 0
      %603 = vmatprep.subr.bf16.mxu0 0
      %604 = vmatpush1.bf16.xpose.msra.mxu0 0
      %605 = vmatprep.subr.bf16.mxu0 0
      %606 = vmatpush1.bf16.xpose.msra.mxu0 0
      %607 = vmatprep.subr.bf16.mxu0 0
      %608 = vmatpush1.bf16.xpose.msra.mxu0 0
      %609 = vmatprep.subr.bf16.mxu0 0
      %610 = vmatpush1.bf16.xpose.msra.mxu0 0
      %611 = vmatprep.subr.bf16.mxu0 0
      %612 = vmatpush1.bf16.xpose.msra.mxu0 0
      %613 = vmatprep.subr.bf16.mxu0 0
      %614 = vmatpush1.bf16.xpose.msra.mxu0 0
      %615 = vmatprep.subr.bf16.mxu0 0
      %616 = vmatpush1.bf16.xpose.msra.mxu0 0
      %617 = vmatprep.mubr.bf16.mxu0 0
      %618 = vmatmul.mubr.bf16.gmra.mrb[0].mxu0 %v574
      %v619 = vpop.f32.mrb[0].mxu0
      %v620 = vadd.f32 0.0, %v619
      %v621 = vpop.f32.mrb[0].mxu0
      %v622 = vpop.f32.mrb[0].mxu0
      %v623 = vadd.f32 0.0, %v622
      %v624 = vpop.f32.mrb[0].mxu0
      %625 = vmatprep.mubr.bf16.mxu0 0
      %626 = vmatmul.mubr.bf16.gmra.mrb[0].mxu0 %v577
      %v627 = vpop.f32.mrb[0].mxu0
      %v628 = vadd.f32 0.0, %v627
      %v629 = vpop.f32.mrb[0].mxu0
      %v630 = vpop.f32.mrb[0].mxu0
      %v631 = vadd.f32 0.0, %v630
      %v632 = vpop.f32.mrb[0].mxu0
      %633 = vdwg.mxu0
      %v634 = vlaneseq
      %v635 = vshrl.u32 %v634, 7
      %v636 = vadd.s32 %v635, 8
      %v637 = vadd.s32 %v635, 16
      %v638 = vadd.s32 %v635, 24
      %v639 = vlaneseq
      %v640 = vand.u32 %v639, 127
      %vm641 = vcmp.le.s32.totalorder %v640, %v635
      %vm642 = vcmp.le.s32.totalorder %v640, %v636
      %vm643 = vcmp.le.s32.totalorder %v640, %v637
      %vm644 = vcmp.le.s32.totalorder %v640, %v638
      %v645 = vsel %vm641, %v620, -inf
      %v646 = vsel %vm642, %v623, -inf
      %v647 = vsel %vm643, %v628, -inf
      %v648 = vsel %vm644, %v631, -inf
      %vm649 = vcmask 261120
      %v650 = vsel %vm649, %v645, -inf
      %651 = vmax.xlane.f32.xlu0 %v650
      %v652 = vpop.xlane.xlu0 %651
      %v653 = vsel %vm649, %v646, -inf
      %654 = vmax.xlane.f32.xlu0 %v653
      %v655 = vpop.xlane.xlu0 %654
      %v656 = vsel %vm649, %v647, -inf
      %657 = vmax.xlane.f32.xlu0 %v656
      %v658 = vpop.xlane.xlu0 %657
      %v659 = vsel %vm649, %v648, -inf
      %660 = vmax.xlane.f32.xlu0 %v659
      %v661 = vpop.xlane.xlu0 %660
      %v662 = vsub.f32 %v645, %v652
      %v663 = vsub.f32 %v646, %v655
      %v664 = vsub.f32 %v647, %v658
      %v665 = vsub.f32 %v648, %v661
      %v666 = vmul.f32 %v662, 1.442695
      %v667 = vpow.pop %v666
      %v668 = vmul.f32 %v663, 1.442695
      %v669 = vpow.pop %v668
      %v670 = vmul.f32 %v664, 1.442695
      %v671 = vpow.pop %v670
      %v672 = vmul.f32 %v665, 1.442695
      %v673 = vpow.pop %v672
      %v674 = vsel %vm649, %v667, 0.0
      %675 = vadd.xlane.f32.xlu0 %v674
      %v676 = vpop.xlane.xlu0 %675
      %v677 = vsel %vm649, %v669, 0.0
      %678 = vadd.xlane.f32.xlu0 %v677
      %v679 = vpop.xlane.xlu0 %678
      %v680 = vsel %vm649, %v671, 0.0
      %681 = vadd.xlane.f32.xlu0 %v680
      %v682 = vpop.xlane.xlu0 %681
      %v683 = vsel %vm649, %v673, 0.0
      %684 = vadd.xlane.f32.xlu0 %v683
      %v685 = vpop.xlane.xlu0 %684
      %v686 = vrcp.pop %v676
      %v687 = vrcp.pop %v679
      %v688 = vrcp.pop %v682
      %v689 = vrcp.pop %v685
      %v690 = vmul.f32 %v667, %v686
      %v691 = vmul.f32 %v669, %v687
      %v692 = vmul.f32 %v671, %v688
      %v693 = vmul.f32 %v673, %v689
      %v694 = vpack.c.bf16 %v691, %v690
      %v695 = vpack.c.bf16 %v693, %v692
      %v697 = vsel %vm649, %v694, 0
      %v700 = vsel %vm649, %v695, 0
      %702 = vmatprep.subr.bf16.mxu0 0
      %703 = vmatpush1.bf16.msra.mxu0 %v564
      %704 = vmatprep.subr.bf16.mxu0 0
      %705 = vmatpush1.bf16.msra.mxu0 %v565
      %706 = vmatprep.subr.bf16.mxu0 0
      %707 = vmatpush1.bf16.msra.mxu0 0
      %708 = vmatprep.subr.bf16.mxu0 0
      %709 = vmatpush1.bf16.msra.mxu0 0
      %710 = vmatprep.subr.bf16.mxu0 0
      %711 = vmatpush1.bf16.msra.mxu0 0
      %712 = vmatprep.subr.bf16.mxu0 0
      %713 = vmatpush1.bf16.msra.mxu0 0
      %714 = vmatprep.subr.bf16.mxu0 0
      %715 = vmatpush1.bf16.msra.mxu0 0
      %716 = vmatprep.subr.bf16.mxu0 0
      %717 = vmatpush1.bf16.msra.mxu0 0
      %718 = vmatprep.subr.bf16.mxu0 0
      %719 = vmatpush1.bf16.msra.mxu0 0
      %720 = vmatprep.subr.bf16.mxu0 0
      %721 = vmatpush1.bf16.msra.mxu0 0
      %722 = vmatprep.subr.bf16.mxu0 0
      %723 = vmatpush1.bf16.msra.mxu0 0
      %724 = vmatprep.subr.bf16.mxu0 0
      %725 = vmatpush1.bf16.msra.mxu0 0
      %726 = vmatprep.subr.bf16.mxu0 0
      %727 = vmatpush1.bf16.msra.mxu0 0
      %728 = vmatprep.subr.bf16.mxu0 0
      %729 = vmatpush1.bf16.msra.mxu0 0
      %730 = vmatprep.subr.bf16.mxu0 0
      %731 = vmatpush1.bf16.msra.mxu0 0
      %732 = vmatprep.subr.bf16.mxu0 0
      %733 = vmatpush1.bf16.msra.mxu0 0
      %734 = vmatprep.mubr.bf16.mxu0 0
      %735 = vmatmul.mubr.bf16.gmra.mrb[0].mxu0 %v697
      %v736 = vpop.f32.mrb[0].mxu0
      %v737 = vadd.f32 0.0, %v736
      %v738 = vpop.f32.mrb[0].mxu0
      %v739 = vpop.f32.mrb[0].mxu0
      %v740 = vadd.f32 0.0, %v739
      %v741 = vpop.f32.mrb[0].mxu0
      %742 = vmatprep.mubr.bf16.mxu0 0
      %743 = vmatmul.mubr.bf16.gmra.mrb[0].mxu0 %v700
      %v744 = vpop.f32.mrb[0].mxu0
      %v745 = vadd.f32 0.0, %v744
      %v746 = vpop.f32.mrb[0].mxu0
      %v747 = vpop.f32.mrb[0].mxu0
      %v748 = vadd.f32 0.0, %v747
      %v749 = vpop.f32.mrb[0].mxu0
      %750 = vdwg.mxu0
      %753 = vrot.lane.b32.xlu0 %v745, 64
      %v754 = vpop.permute.xlu0 %753
      %755 = vrot.lane.b32.xlu0 %v748, 64
      %v756 = vpop.permute.xlu0 %755
      %v759 = vsel %vm572, %v737, %v754
      %v760 = vsel %vm572, %v740, %v756
      %761 = vst [vmem:[%s148] sm:$0xff] %v759
      %762 = vst [vmem:[%s148 + $0x8] sm:$0xff] %v760
      %p763 = scmp.lt.s32.totalorder %s13, 1
      %s764 = scalar_select %p763, %s13, 1
      %s765 = smul.addr %s764, 2
      %s766 = smul.addr %s765, 8
      %s767 = scalar_lea.vmem %s2, %s766
      // Predicated region
      $region29: #{head_forward.1} parent=27 // pred_check
        %p768 = pneg %p78
      $region30: #{head_forward.1} parent=27 // pred_check_branch
        %770 = sbr.rel (%p768) target = $region32
      $region31: #{head_forward.1} parent=27 // pred_region
        _
      $region32: #{head_forward.1} parent=27 // pred_fallthru
        _
    $region28: #{head_forward.1} parent=5 // pred_fallthru
      _
    %p771 = scmp.le.s32.totalorder 2, %s8
    // Predicated region
    $region33: #{head_forward.1} parent=5 // pred_check
      %p772 = pneg %p771
    $region34: #{head_forward.1} parent=5 // pred_check_branch
      %774 = sbr.rel (%p772) target = $region36
    $region35: #{head_forward.1} parent=5 // pred_region
      %s775 = ssub.s32 %s8, 2
      // Predicated region
      $region37: #{head_forward.1} parent=35 // pred_check
        %p776 = pneg %p84
      $region38: #{head_forward.1} parent=35 // pred_check_branch
        %778 = sbr.rel (%p776) target = $region40
      $region39: #{head_forward.1} parent=35 // pred_region
        %p779 = scmp.lt.s32.totalorder %s14, 1
        %s780 = scalar_select %p779, %s14, 1
        %s781 = smul.addr %s780, 2
        %s782 = smul.addr %s781, 8
        %s783 = scalar_lea.vmem %s2, %s782
      $region40: #{head_forward.1} parent=35 // pred_fallthru
        _
    $region36: #{head_forward.1} parent=5 // pred_fallthru
      _
  $region6: #{head_forward.1} parent=0 // loop_footer
    %s12 = sadd.s32 1, %s8
  $region7: #{head_forward.1} parent=0 // loop_footer_branch
    %7 = sbr.rel target = $region3
  $region8: #{head_forward.1} parent=0 // loop_exit
    _

</llo_original>
